<compile_context>
chip_gen: v7x
topology: tpu7x:2x2x1
jax: 0.10.0
libtpu: 0.0.40
codegen_flags: <defaults>
</compile_context>

<pallas_src>
import math

import jax
import jax.numpy as jnp
from jax.experimental import pallas as pl
from jax.experimental.pallas import tpu as pltpu


def _agg_kernel(x_ref, w_ref, b_ref, v_ref, o_ref):
    # x_ref: (TB, S, D) tile of TB batch rows
    # w_ref: (D, D)  -- query weight, pre-transposed so keys = x @ w + b
    # b_ref: (1, D)  -- query bias
    # v_ref: (1, D)  -- attention vector
    # o_ref: (TB, D) -- output tile
    tb, S, D = x_ref.shape
    inv_sqrt_d = 1.0 / math.sqrt(float(D))

    xb = x_ref[...]                          # (TB, S, D), native dtype
    x2 = xb.reshape(tb * S, D)               # dense MXU M-dimension = TB*S

    # keys = sigmoid(x @ W^T + b): matmul in native dtype, f32 accumulation,
    # elementwise math in f32.
    keys = jnp.dot(x2, w_ref[...], preferred_element_type=jnp.float32)
    keys = jax.nn.sigmoid(keys + b_ref[...].astype(jnp.float32))   # (TB*S, D) f32

    # Scores laid out (TB, S): S on the lane axis -> dense vregs for softmax.
    keys3 = keys.reshape(tb, S, D)
    v = v_ref[...].astype(jnp.float32)                              # (1, D)
    scores = jnp.sum(keys3 * v, axis=-1) * inv_sqrt_d               # (TB, S) f32

    # Softmax over the sequence (lane) axis.
    m = jnp.max(scores, axis=-1, keepdims=True)                     # (TB, 1)
    e = jnp.exp(scores - m)                                         # (TB, S)
    denom = jnp.sum(e, axis=-1, keepdims=True)                      # (TB, 1)
    attn = e * pl.reciprocal(denom, approx=True)                    # (TB, S)

    # Weighted sum over S on the MXU: (TB,1,S) @ (TB,S,D) -> (TB,1,D).
    attn3 = attn.astype(xb.dtype).reshape(tb, 1, S)
    out = jnp.einsum('bqs,bsd->bqd', attn3, xb,
                     preferred_element_type=jnp.float32)            # (TB, 1, D)
    o_ref[...] = out.reshape(tb, D).astype(o_ref.dtype)


def _choose_block_b(B, S, D, itemsize):
    """Pick TB so TB*S gives a reasonably full MXU M-dim without blowing VMEM."""
    tb = max(1, pl.cdiv(256, S))
    if tb >= B:
        tb = B                                   # single grid step
    else:
        tb = max(8, (tb // 8) * 8)               # sublane-aligned output blocks
    # Keep the double-buffered x tile within a modest VMEM budget.
    budget = 16 * 1024 * 1024
    while tb > 8 and 2 * tb * S * D * itemsize > budget:
        tb -= 8
    return tb


@jax.jit
def query_attention_aggregator(x, w_t, b, v):
    """x: (B, S, D); w_t: (D, D) (= W_q.T); b: (D,); v: (D,). Returns (B, D)."""
    B, S, D = x.shape
    itemsize = jnp.dtype(x.dtype).itemsize
    tb = _choose_block_b(B, S, D, itemsize)

    # Pad batch to a multiple of TB (padded rows are finite garbage, sliced off).
    Bp = pl.cdiv(B, tb) * tb
    xp = x if Bp == B else jnp.pad(x, ((0, Bp - B), (0, 0), (0, 0)))

    b2 = b.reshape(1, D)
    v2 = v.reshape(1, D)

    # Size the scoped VMEM limit to the tiles (x/out double-buffered, W/b/v
    # resident, f32 temporaries), clamped to stay safe on v7x (64 MiB VMEM).
    est = (2 * tb * S * D * itemsize        # x tile, double buffered
           + 2 * tb * D * itemsize          # out tile, double buffered
           + (D * D + 2 * D) * itemsize     # W, b, v
           + 3 * tb * S * D * 4)            # f32 keys / temporaries headroom
    vmem_limit = int(min(64 * 2**20, max(16 * 2**20, 2 * est)))

    out = pl.pallas_call(
        _agg_kernel,
        out_shape=jax.ShapeDtypeStruct((Bp, D), x.dtype),
        grid_spec=pltpu.PrefetchScalarGridSpec(
            num_scalar_prefetch=0,
            grid=(Bp // tb,),
            in_specs=[
                pl.BlockSpec((tb, S, D), lambda i: (i, 0, 0)),  # x, TB rows
                pl.BlockSpec((D, D), lambda i: (0, 0)),         # query weight (T)
                pl.BlockSpec((1, D), lambda i: (0, 0)),         # query bias
                pl.BlockSpec((1, D), lambda i: (0, 0)),         # attention vector
            ],
            out_specs=pl.BlockSpec((tb, D), lambda i: (i, 0)),
        ),
        compiler_params=pltpu.CompilerParams(
            dimension_semantics=("parallel",),
            vmem_limit_bytes=vmem_limit),
    )(xp, w_t, b2, v2)
    return out[:B]


def _reference(x, w_t, b, v):
    keys = jax.nn.sigmoid(jnp.einsum("bsd,de->bse", x, w_t) + b)
    dots = jnp.einsum("bsd,d->bs", keys, v) / math.sqrt(x.shape[-1])
    attn = jax.nn.softmax(dots, axis=-1)
    return jnp.einsum("bs,bsd->bd", attn, x)


if __name__ == "__main__":
    B, S, D = 2, 8, 32
    key = jax.random.PRNGKey(0)
    kx, kw, kb, kv = jax.random.split(key, 4)

    x = jax.random.normal(kx, (B, S, D), dtype=jnp.float32)
    # nn.Linear(D, D): weight (D, D), bias (D,). We pass W.T so kernel does x @ w.
    w = jax.random.normal(kw, (D, D), dtype=jnp.float32) * (1.0 / math.sqrt(D))
    w_t = w.T
    b = jax.random.normal(kb, (D,), dtype=jnp.float32) * 0.1
    # nn.Parameter(torch.zeros(D)) in the module; use a non-zero init here so
    # the attention is non-trivial for testing.
    v = jax.random.normal(kv, (D,), dtype=jnp.float32) * 0.1

    out = query_attention_aggregator(x, w_t, b, v)
    out = jax.block_until_ready(out)

    ref = _reference(x, w_t, b, v)
    assert out.shape == (B, D)
    # Tolerance loosened slightly vs 1e-5 to cover the EUP approx reciprocal.
    assert jnp.allclose(out, ref, atol=1e-3, rtol=1e-3), (
        f"max abs err {jnp.max(jnp.abs(out - ref))}")

    print("KERNEL_OK")
</pallas_src>

<mosaic_0001>
module attributes {stable_mosaic.version = 11 : i64} {
  func.func @_agg_kernel(%arg0: i32, %arg1: memref<2x8x32xf32, #tpu.memory_space<vmem>>, %arg2: memref<32x32xf32, #tpu.memory_space<vmem>>, %arg3: memref<1x32xf32, #tpu.memory_space<vmem>>, %arg4: memref<1x32xf32, #tpu.memory_space<vmem>>, %arg5: memref<2x32xf32, #tpu.memory_space<vmem>>) attributes {dimension_semantics = [#tpu.dimension_semantics<parallel>], iteration_bounds = array<i64: 1>, scalar_prefetch = 0 : i64, scratch_operands = 0 : i64, tpu.core_type = #tpu.core_type<tc>, window_params = [{transform_indices = @transform_0, window_bounds = array<i64: 2, 8, 32>}, {pipeline_mode = #tpu.pipeline_mode<synchronous>, transform_indices = @transform_1, window_bounds = array<i64: 32, 32>}, {pipeline_mode = #tpu.pipeline_mode<synchronous>, transform_indices = @transform_2, window_bounds = array<i64: 1, 32>}, {pipeline_mode = #tpu.pipeline_mode<synchronous>, transform_indices = @transform_3, window_bounds = array<i64: 1, 32>}, {transform_indices = @transform_4, window_bounds = array<i64: 2, 32>}]} {
    %c0 = arith.constant 0 : index
    %c0_0 = arith.constant 0 : index
    %c0_1 = arith.constant 0 : index
    %0 = vector.load %arg1[%c0, %c0_0, %c0_1] : memref<2x8x32xf32, #tpu.memory_space<vmem>>, vector<2x8x32xf32>
    %1 = vector.shape_cast %0 : vector<2x8x32xf32> to vector<16x32xf32>
    %c0_2 = arith.constant 0 : index
    %c0_3 = arith.constant 0 : index
    %2 = vector.load %arg2[%c0_2, %c0_3] : memref<32x32xf32, #tpu.memory_space<vmem>>, vector<32x32xf32>
    %cst = arith.constant dense<0.000000e+00> : vector<16x32xf32>
    %3 = tpu.matmul %1, %2, %cst {dimension_numbers = #tpu.dot_dimension_numbers<[1], [0], [0], [1], [0, 0, 1, 1], [], []>} : vector<16x32xf32>, vector<32x32xf32>, vector<16x32xf32> -> vector<16x32xf32>
    %c0_4 = arith.constant 0 : index
    %c0_5 = arith.constant 0 : index
    %4 = vector.load %arg3[%c0_4, %c0_5] : memref<1x32xf32, #tpu.memory_space<vmem>>, vector<1x32xf32>
    %5 = vector.broadcast %4 : vector<1x32xf32> to vector<16x32xf32>
    %6 = arith.addf %3, %5 : vector<16x32xf32>
    %7 = arith.negf %6 : vector<16x32xf32>
    %8 = math.exp %7 : vector<16x32xf32>
    %cst_6 = arith.constant 1.000000e+00 : f32
    %9 = vector.broadcast %cst_6 : f32 to vector<16x32xf32>
    %10 = arith.addf %9, %8 : vector<16x32xf32>
    %11 = arith.divf %9, %10 : vector<16x32xf32>
    %12 = vector.shape_cast %11 : vector<16x32xf32> to vector<2x8x32xf32>
    %c0_7 = arith.constant 0 : index
    %c0_8 = arith.constant 0 : index
    %13 = vector.load %arg4[%c0_7, %c0_8] : memref<1x32xf32, #tpu.memory_space<vmem>>, vector<1x32xf32>
    %14 = vector.shape_cast %13 : vector<1x32xf32> to vector<1x1x32xf32>
    %15 = vector.broadcast %14 : vector<1x1x32xf32> to vector<2x8x32xf32>
    %16 = arith.mulf %12, %15 : vector<2x8x32xf32>
    %cst_9 = arith.constant dense<0.000000e+00> : vector<2x8xf32>
    %17 = vector.multi_reduction <add>, %16, %cst_9 [2] : vector<2x8x32xf32> to vector<2x8xf32>
    %cst_10 = arith.constant 0.176776692 : f32
    %18 = vector.broadcast %cst_10 : f32 to vector<2x8xf32>
    %19 = arith.mulf %17, %18 : vector<2x8xf32>
    %cst_11 = arith.constant dense<0xFF800000> : vector<2xf32>
    %20 = vector.multi_reduction <maximumf>, %19, %cst_11 [1] : vector<2x8xf32> to vector<2xf32>
    %21 = vector.shape_cast %20 : vector<2xf32> to vector<2x1xf32>
    %22 = vector.broadcast %21 : vector<2x1xf32> to vector<2x8xf32>
    %23 = arith.subf %19, %22 : vector<2x8xf32>
    %24 = math.exp %23 : vector<2x8xf32>
    %cst_12 = arith.constant dense<0.000000e+00> : vector<2xf32>
    %25 = vector.multi_reduction <add>, %24, %cst_12 [1] : vector<2x8xf32> to vector<2xf32>
    %26 = vector.shape_cast %25 : vector<2xf32> to vector<2x1xf32>
    %27 = tpu.reciprocal %26 {approx = true} : vector<2x1xf32> -> vector<2x1xf32>
    %28 = vector.broadcast %27 : vector<2x1xf32> to vector<2x8xf32>
    %29 = arith.mulf %24, %28 : vector<2x8xf32>
    %30 = vector.shape_cast %29 : vector<2x8xf32> to vector<2x1x8xf32>
    "tpu.trace_start"() <{level = 10 : i32, message = "bqs,bsd->bqd"}> : () -> ()
    %cst_13 = arith.constant dense<0.000000e+00> : vector<2x1x32xf32>
    %31 = tpu.matmul %30, %0, %cst_13 {dimension_numbers = #tpu.dot_dimension_numbers<[2], [1], [1], [2], [0, 0, 0, 1, 1, 2], [0], [0]>} : vector<2x1x8xf32>, vector<2x8x32xf32>, vector<2x1x32xf32> -> vector<2x1x32xf32>
    "tpu.trace_stop"() : () -> ()
    %32 = vector.shape_cast %31 : vector<2x1x32xf32> to vector<2x32xf32>
    %c0_14 = arith.constant 0 : index
    %c0_15 = arith.constant 0 : index
    %33 = vector.load %arg5[%c0_14, %c0_15] : memref<2x32xf32, #tpu.memory_space<vmem>>, vector<2x32xf32>
    tpu.vector_store %arg5[%c0_14, %c0_15], %32 {strides = array<i32>} : memref<2x32xf32, #tpu.memory_space<vmem>>, vector<2x32xf32>,
    return
  }
  func.func @transform_0(%arg0: i32) -> (i32, i32, i32) {
    %c0_i32 = arith.constant 0 : i32
    %c0_i32_0 = arith.constant 0 : i32
    %c0_i32_1 = arith.constant 0 : i32
    return %arg0, %c0_i32, %c0_i32_0 : i32, i32, i32
  }
  func.func @transform_1(%arg0: i32) -> (i32, i32) {
    %c0_i32 = arith.constant 0 : i32
    %c0_i32_0 = arith.constant 0 : i32
    %c0_i32_1 = arith.constant 0 : i32
    return %c0_i32, %c0_i32_0 : i32, i32
  }
  func.func @transform_2(%arg0: i32) -> (i32, i32) {
    %c0_i32 = arith.constant 0 : i32
    %c0_i32_0 = arith.constant 0 : i32
    %c0_i32_1 = arith.constant 0 : i32
    return %c0_i32, %c0_i32_0 : i32, i32
  }
  func.func @transform_3(%arg0: i32) -> (i32, i32) {
    %c0_i32 = arith.constant 0 : i32
    %c0_i32_0 = arith.constant 0 : i32
    %c0_i32_1 = arith.constant 0 : i32
    return %c0_i32, %c0_i32_0 : i32, i32
  }
  func.func @transform_4(%arg0: i32) -> (i32, i32) {
    %c0_i32 = arith.constant 0 : i32
    %c0_i32_0 = arith.constant 0 : i32
    return %arg0, %c0_i32 : i32, i32
  }
}

</mosaic_0001>

<llo_original>
// kernel: query_attention_aggregator.1
$region0: #{query_attention_aggregator.1}
  #allocation0 [shape = 'u32[]', space=smem, size = 0x4, offset = 0x4, fixed_abs, tag = 'smem constant byte address 0x4 - core index']
  #allocation1 [shape = 'u32[144,128]{1,0:T(1,128)}', space=vmem, size = 0x12000, scoped, tag = 'internal scratch']
  %s0 = inlined_call_operand.hbm [shape: f32[2,8,32], index: 0, kind: input, shape index: {}]
  %s1 = inlined_call_operand.hbm [shape: f32[32,32], index: 1, kind: input, shape index: {}]
  %s2 = inlined_call_operand.vmem [shape: f32[1,32], index: 2, kind: input, shape index: {}]
  %s3 = inlined_call_operand.vmem [shape: f32[1,32], index: 3, kind: input, shape index: {}]
  %s4 = inlined_call_operand.hbm [shape: f32[2,32], index: 4, kind: output, shape index: {}]
  %s5 = sld [smem:[#allocation0]]
  $region34: #{query_attention_aggregator.1} parent=0
    _
  %s7 = ssub.s32 1, %s5
  %s8 = scalar_select 0, %s7, %s5
  $region1: #{query_attention_aggregator.1} parent=0
    #allocation2 [shape = 'u8[8192]{0}', space=vmem, size = 0x2000, scoped, tag = 'input window, operand 0, single buffered']
    #allocation3 [shape = 's32[1]{0}', space=sflag, size = 0x4, scoped, tag = 'scoped memory for query_attention_aggregator.1']
    #allocation4 [shape = 's32[1]{0}', space=sflag, size = 0x4, scoped, tag = 'scoped memory for query_attention_aggregator.1']
    #allocation5 [shape = 'u8[16384]{0}', space=vmem, size = 0x4000, scoped, tag = 'input window, operand 1, single buffered']
    #allocation6 [shape = 's32[1]{0}', space=sflag, size = 0x4, scoped, tag = 'scoped memory for query_attention_aggregator.1']
    #allocation7 [shape = 'u8[1024]{0}', space=vmem, size = 0x400, scoped, tag = 'output window, operand 0, single buffered']
    %9 = vsyncpa [#allocation3], 0
    %10 = vsyncpa [#allocation6], 0
    %11 = vsyncpa [#allocation4], 0
    // Predicated region
    $region2: #{query_attention_aggregator.1} parent=1 // pred_check
      _
    $region3: #{query_attention_aggregator.1} parent=1 // pred_check_branch
      %13 = sbr.rel (0) target = $region5
    $region4: #{query_attention_aggregator.1} parent=1 // pred_region
      %s15 = ssub.s32 256, 256
      %16 = vsyncadd [#allocation3], %s15
      %s17 = sshll.u32 [#allocation2], 4
      %s18 = int_to_ptr.vmem [resolvable:$true] %s17
      %23 = dma.hbm_to_vmem [thread:$0]  %s0, 256, %s18, [#allocation3], 128, 128, 8
    $region5: #{query_attention_aggregator.1} parent=1 // pred_fallthru
      _
    // Predicated region
    $region6: #{query_attention_aggregator.1} parent=1 // pred_check
      _
    $region7: #{query_attention_aggregator.1} parent=1 // pred_check_branch
      %25 = sbr.rel (0) target = $region9
    $region8: #{query_attention_aggregator.1} parent=1 // pred_region
      %s27 = ssub.s32 512, 512
      %28 = vsyncadd [#allocation6], %s27
      %s29 = sshll.u32 [#allocation5], 4
      %s30 = int_to_ptr.vmem [resolvable:$true] %s29
      %35 = dma.hbm_to_vmem [thread:$0]  %s1, 512, %s30, [#allocation6], 128, 128, 8
    $region9: #{query_attention_aggregator.1} parent=1 // pred_fallthru
      _
    // Predicated region
    $region10: #{query_attention_aggregator.1} parent=1 // pred_check
      _
    $region11: #{query_attention_aggregator.1} parent=1 // pred_check_branch
      %37 = sbr.rel (0) target = $region13
    $region12: #{query_attention_aggregator.1} parent=1 // pred_region
      _
    $region13: #{query_attention_aggregator.1} parent=1 // pred_fallthru
      _
    // Predicated region
    $region14: #{query_attention_aggregator.1} parent=1 // pred_check
      _
    $region15: #{query_attention_aggregator.1} parent=1 // pred_check_branch
      %39 = sbr.rel (0) target = $region17
    $region16: #{query_attention_aggregator.1} parent=1 // pred_region
      _
    $region17: #{query_attention_aggregator.1} parent=1 // pred_fallthru
      _
    // Predicated region
    $region18: #{query_attention_aggregator.1} parent=1 // pred_check
      _
    $region19: #{query_attention_aggregator.1} parent=1 // pred_check_branch
      %41 = sbr.rel (0) target = $region21
    $region20: #{query_attention_aggregator.1} parent=1 // pred_region
      %42 = dma.done [#allocation3], 256
    $region21: #{query_attention_aggregator.1} parent=1 // pred_fallthru
      _
    // Predicated region
    $region22: #{query_attention_aggregator.1} parent=1 // pred_check
      _
    $region23: #{query_attention_aggregator.1} parent=1 // pred_check_branch
      %44 = sbr.rel (0) target = $region25
    $region24: #{query_attention_aggregator.1} parent=1 // pred_region
      %45 = dma.done [#allocation6], 512
    $region25: #{query_attention_aggregator.1} parent=1 // pred_fallthru
      _
    %v46 = vld [vmem:[#allocation2] sm:$0xff]
    %v47 = vld [vmem:[#allocation2 + $0x8] sm:$0xff]
    %v48 = vld [vmem:[#allocation5] sm:$0xff]
    %v49 = vld [vmem:[#allocation5 + $0x8] sm:$0xff]
    %v50 = vld [vmem:[#allocation5 + $0x10] sm:$0xff]
    %v51 = vld [vmem:[#allocation5 + $0x18] sm:$0xff]
    %v52 = vld [vmem:[%s2] sm:$0x1]
    %v54 = vlaneseq
    %v55 = vshrl.u32 %v54, 7
    %v56 = vsub.s32 0, %v55
    %v57 = vrot.slane %v52, %v56
    %vm59 = vcmask 261120
    %v61 = vsel %vm59, %v46, 0
    %v64 = vsel %vm59, %v47, 0
    %66 = vmatprep.subr.mxu0 0.0
    %67 = vmatpush1.msra.mxu0 %v48
    %68 = vmatprep.subr.mxu0 0.0
    %69 = vmatpush1.msra.mxu0 %v49
    %70 = vmatprep.subr.mxu0 0.0
    %71 = vmatpush1.msra.mxu0 %v50
    %72 = vmatprep.subr.mxu0 0.0
    %73 = vmatpush1.msra.mxu0 %v51
    %74 = vmatprep.subr.mxu0 0.0
    %75 = vmatpush1.msra.mxu0 0.0
    %76 = vmatprep.subr.mxu0 0.0
    %77 = vmatpush1.msra.mxu0 0.0
    %78 = vmatprep.subr.mxu0 0.0
    %79 = vmatpush1.msra.mxu0 0.0
    %80 = vmatprep.subr.mxu0 0.0
    %81 = vmatpush1.msra.mxu0 0.0
    %82 = vmatprep.subr.mxu0 0.0
    %83 = vmatpush1.msra.mxu0 0.0
    %84 = vmatprep.subr.mxu0 0.0
    %85 = vmatpush1.msra.mxu0 0.0
    %86 = vmatprep.subr.mxu0 0.0
    %87 = vmatpush1.msra.mxu0 0.0
    %88 = vmatprep.subr.mxu0 0.0
    %89 = vmatpush1.msra.mxu0 0.0
    %90 = vmatprep.subr.mxu0 0.0
    %91 = vmatpush1.msra.mxu0 0.0
    %92 = vmatprep.subr.mxu0 0.0
    %93 = vmatpush1.msra.mxu0 0.0
    %94 = vmatprep.subr.mxu0 0.0
    %95 = vmatpush1.msra.mxu0 0.0
    %96 = vmatprep.subr.mxu0 0.0
    %97 = vmatpush1.msra.mxu0 0.0
    %98 = vmatprep.subr.mxu0 0.0
    %99 = vmatpush1.msra.mxu0 0.0
    %100 = vmatprep.subr.mxu0 0.0
    %101 = vmatpush1.msra.mxu0 0.0
    %102 = vmatprep.subr.mxu0 0.0
    %103 = vmatpush1.msra.mxu0 0.0
    %104 = vmatprep.subr.mxu0 0.0
    %105 = vmatpush1.msra.mxu0 0.0
    %106 = vmatprep.subr.mxu0 0.0
    %107 = vmatpush1.msra.mxu0 0.0
    %108 = vmatprep.subr.mxu0 0.0
    %109 = vmatpush1.msra.mxu0 0.0
    %110 = vmatprep.subr.mxu0 0.0
    %111 = vmatpush1.msra.mxu0 0.0
    %112 = vmatprep.subr.mxu0 0.0
    %113 = vmatpush1.msra.mxu0 0.0
    %114 = vmatprep.subr.mxu0 0.0
    %115 = vmatpush1.msra.mxu0 0.0
    %116 = vmatprep.subr.mxu0 0.0
    %117 = vmatpush1.msra.mxu0 0.0
    %118 = vmatprep.subr.mxu0 0.0
    %119 = vmatpush1.msra.mxu0 0.0
    %120 = vmatprep.subr.mxu0 0.0
    %121 = vmatpush1.msra.mxu0 0.0
    %122 = vmatprep.subr.mxu0 0.0
    %123 = vmatpush1.msra.mxu0 0.0
    %124 = vmatprep.subr.mxu0 0.0
    %125 = vmatpush1.msra.mxu0 0.0
    %126 = vmatprep.subr.mxu0 0.0
    %127 = vmatpush1.msra.mxu0 0.0
    %128 = vmatprep.subr.mxu0 0.0
    %129 = vmatpush1.msra.mxu0 0.0
    %130 = vmatprep.mubr.f32.mxu0 0.0
    %131 = vmatmul.mubr.f32.gmra.mrb[0].mxu0 %v61
    %v132 = vpop.f32.mrb[0].mxu0
    %v133 = vadd.f32 %v57, %v132
    %v134 = vpop.f32.mrb[0].mxu0
    %135 = vmatprep.mubr.f32.mxu0 0.0
    %136 = vmatmul.mubr.f32.gmra.mrb[0].mxu0 %v64
    %v137 = vpop.f32.mrb[0].mxu0
    %v138 = vadd.f32 %v57, %v137
    %v139 = vpop.f32.mrb[0].mxu0
    %140 = vdwg.mxu0
    %v141 = vxor.u32 %v133, 2147483648
    %v142 = vxor.u32 %v138, 2147483648
    %v143 = vmul.f32 %v141, 1.442695
    %v144 = vpow.pop %v143
    %v145 = vmul.f32 %v142, 1.442695
    %v146 = vpow.pop %v145
    %v147 = vadd.f32 %v144, 1.0
    %v148 = vadd.f32 %v146, 1.0
    %v149 = vrcp.pop %v147
    %v150 = vmul.f32 1.0, %v149
    %v151 = vrcp.pop %v148
    %v152 = vmul.f32 1.0, %v151
    %v153 = vld [vmem:[%s3] sm:$0x1]
    %v155 = vlaneseq
    %v156 = vshrl.u32 %v155, 7
    %v157 = vsub.s32 0, %v156
    %v158 = vrot.slane %v153, %v157
    %v160 = vmul.f32 %v150, %v158
    %v161 = vmul.f32 %v152, %v158
    %v162 = vsel %vm59, %v160, 0.0
    %163 = vadd.xlane.f32.xlu0 %v162
    %v164 = vpop.xlane.xlu0 %163
    %v165 = vsel %vm59, %v161, 0.0
    %166 = vadd.xlane.f32.xlu0 %v165
    %v167 = vpop.xlane.xlu0 %166
    %v168 = vmul.f32 %v164, 0.17677669
    %v169 = vmul.f32 %v167, 0.17677669
    %v172 = vlaneseq
    %v173 = vand.u32 %v172, 127
    %v174 = vlaneseq
    %v175 = vshrl.u32 %v174, 7
    %v176 = vsub.s32 %v173, %v175
    %v177 = vrot.slane %v168, %v176
    %v178 = vlaneseq
    %v179 = vshrl.u32 %v178, 7
    %v180 = vsub.s32 %v173, %v179
    %v181 = vrot.slane %v169, %v180
    %vm182 = vcmask 1041409
    %v183 = vsel %vm182, %v181, %v177
    %vm185 = vcmask 58368
    %v186 = vsel %vm185, %v183, -inf
    %187 = vmax.xlane.f32.xlu0 %v186
    %v188 = vpop.xlane.xlu0 %187
    %v190 = vlaneseq
    %v191 = vshrl.u32 %v190, 7
    %v192 = vsub.s32 0, %v191
    %v193 = vrot.slane %v188, %v192
    %v194 = vlaneseq
    %v195 = vshrl.u32 %v194, 7
    %v196 = vsub.s32 1, %v195
    %v197 = vrot.slane %v188, %v196
    %v200 = vsub.f32 %v168, %v193
    %v201 = vsub.f32 %v169, %v197
    %v202 = vmul.f32 %v200, 1.442695
    %v203 = vpow.pop %v202
    %v204 = vmul.f32 %v201, 1.442695
    %v205 = vpow.pop %v204
    %208 = vset.pattern.permute.xlu0 0
    %209 = vperm.xlu0 %208, %v203
    %v210 = vpop.permute.xlu0 %209
    %211 = vset.pattern.permute.xlu0 0
    %212 = vperm.xlu0 %211, %v205
    %v213 = vpop.permute.xlu0 %212
    %v214 = vlaneseq
    %v215 = vshrl.u32 %v214, 7
    %v216 = vsub.s32 %v173, %v215
    %v217 = vrot.slane %v210, %v216
    %v218 = vlaneseq
    %v219 = vshrl.u32 %v218, 7
    %v220 = vsub.s32 %v173, %v219
    %v221 = vrot.slane %v213, %v220
    %v222 = vsel %vm182, %v221, %v217
    %v224 = vsel %vm185, %v222, 0.0
    %225 = vadd.xlane.f32.xlu0 %v224
    %v226 = vpop.xlane.xlu0 %225
    %v227 = vrcp.pop %v226
    %v229 = vlaneseq
    %v230 = vshrl.u32 %v229, 7
    %v231 = vsub.s32 0, %v230
    %v232 = vrot.slane %v227, %v231
    %v233 = vlaneseq
    %v234 = vshrl.u32 %v233, 7
    %v235 = vsub.s32 1, %v234
    %v236 = vrot.slane %v227, %v235
    %v239 = vmul.f32 %v203, %v232
    %v240 = vmul.f32 %v205, %v236
    %242 = vset.pattern.permute.xlu0 0
    %243 = vperm.xlu0 %242, %v239
    %v244 = vpop.permute.xlu0 %243
    %v245 = vlaneseq
    %v246 = vshrl.u32 %v245, 7
    %v247 = vsub.s32 %v173, %v246
    %v248 = vrot.slane %v244, %v247
    %vm249 = vcmask 64512
    %v250 = vsel %vm249, %v248, 0
    %252 = vmatprep.subr.mxu0 0.0
    %253 = vmatpush1.msra.mxu0 %v46
    %254 = vmatprep.subr.mxu0 0.0
    %255 = vmatpush1.msra.mxu0 0.0
    %256 = vmatprep.subr.mxu0 0.0
    %257 = vmatpush1.msra.mxu0 0.0
    %258 = vmatprep.subr.mxu0 0.0
    %259 = vmatpush1.msra.mxu0 0.0
    %260 = vmatprep.subr.mxu0 0.0
    %261 = vmatpush1.msra.mxu0 0.0
    %262 = vmatprep.subr.mxu0 0.0
    %263 = vmatpush1.msra.mxu0 0.0
    %264 = vmatprep.subr.mxu0 0.0
    %265 = vmatpush1.msra.mxu0 0.0
    %266 = vmatprep.subr.mxu0 0.0
    %267 = vmatpush1.msra.mxu0 0.0
    %268 = vmatprep.subr.mxu0 0.0
    %269 = vmatpush1.msra.mxu0 0.0
    %270 = vmatprep.subr.mxu0 0.0
    %271 = vmatpush1.msra.mxu0 0.0
    %272 = vmatprep.subr.mxu0 0.0
    %273 = vmatpush1.msra.mxu0 0.0
    %274 = vmatprep.subr.mxu0 0.0
    %275 = vmatpush1.msra.mxu0 0.0
    %276 = vmatprep.subr.mxu0 0.0
    %277 = vmatpush1.msra.mxu0 0.0
    %278 = vmatprep.subr.mxu0 0.0
    %279 = vmatpush1.msra.mxu0 0.0
    %280 = vmatprep.subr.mxu0 0.0
    %281 = vmatpush1.msra.mxu0 0.0
    %282 = vmatprep.subr.mxu0 0.0
    %283 = vmatpush1.msra.mxu0 0.0
    %284 = vmatprep.subr.mxu0 0.0
    %285 = vmatpush1.msra.mxu0 0.0
    %286 = vmatprep.subr.mxu0 0.0
    %287 = vmatpush1.msra.mxu0 0.0
    %288 = vmatprep.subr.mxu0 0.0
    %289 = vmatpush1.msra.mxu0 0.0
    %290 = vmatprep.subr.mxu0 0.0
    %291 = vmatpush1.msra.mxu0 0.0
    %292 = vmatprep.subr.mxu0 0.0
    %293 = vmatpush1.msra.mxu0 0.0
    %294 = vmatprep.subr.mxu0 0.0
    %295 = vmatpush1.msra.mxu0 0.0
    %296 = vmatprep.subr.mxu0 0.0
    %297 = vmatpush1.msra.mxu0 0.0
    %298 = vmatprep.subr.mxu0 0.0
    %299 = vmatpush1.msra.mxu0 0.0
    %300 = vmatprep.subr.mxu0 0.0
    %301 = vmatpush1.msra.mxu0 0.0
    %302 = vmatprep.subr.mxu0 0.0
    %303 = vmatpush1.msra.mxu0 0.0
    %304 = vmatprep.subr.mxu0 0.0
    %305 = vmatpush1.msra.mxu0 0.0
    %306 = vmatprep.subr.mxu0 0.0
    %307 = vmatpush1.msra.mxu0 0.0
    %308 = vmatprep.subr.mxu0 0.0
    %309 = vmatpush1.msra.mxu0 0.0
    %310 = vmatprep.subr.mxu0 0.0
    %311 = vmatpush1.msra.mxu0 0.0
    %312 = vmatprep.subr.mxu0 0.0
    %313 = vmatpush1.msra.mxu0 0.0
    %314 = vmatprep.subr.mxu0 0.0
    %315 = vmatpush1.msra.mxu0 0.0
    %316 = vmatprep.mubr.f32.mxu0 0.0
    %317 = vmatmul.mubr.f32.gmra.mrb[0].mxu0 %v250
    %v318 = vpop.f32.mrb[0].mxu0
    %v319 = vadd.f32 0.0, %v318
    %v320 = vpop.f32.mrb[0].mxu0
    %321 = vdwg.mxu0
    %323 = vset.pattern.permute.xlu0 0
    %324 = vperm.xlu0 %323, %v240
    %v325 = vpop.permute.xlu0 %324
    %v326 = vlaneseq
    %v327 = vshrl.u32 %v326, 7
    %v328 = vsub.s32 %v173, %v327
    %v329 = vrot.slane %v325, %v328
    %v330 = vsel %vm249, %v329, 0
    %332 = vmatprep.subr.mxu0 0.0
    %333 = vmatpush1.msra.mxu0 %v47
    %334 = vmatprep.subr.mxu0 0.0
    %335 = vmatpush1.msra.mxu0 0.0
    %336 = vmatprep.subr.mxu0 0.0
    %337 = vmatpush1.msra.mxu0 0.0
    %338 = vmatprep.subr.mxu0 0.0
    %339 = vmatpush1.msra.mxu0 0.0
    %340 = vmatprep.subr.mxu0 0.0
    %341 = vmatpush1.msra.mxu0 0.0
    %342 = vmatprep.subr.mxu0 0.0
    %343 = vmatpush1.msra.mxu0 0.0
    %344 = vmatprep.subr.mxu0 0.0
    %345 = vmatpush1.msra.mxu0 0.0
    %346 = vmatprep.subr.mxu0 0.0
    %347 = vmatpush1.msra.mxu0 0.0
    %348 = vmatprep.subr.mxu0 0.0
    %349 = vmatpush1.msra.mxu0 0.0
    %350 = vmatprep.subr.mxu0 0.0
    %351 = vmatpush1.msra.mxu0 0.0
    %352 = vmatprep.subr.mxu0 0.0
    %353 = vmatpush1.msra.mxu0 0.0
    %354 = vmatprep.subr.mxu0 0.0
    %355 = vmatpush1.msra.mxu0 0.0
    %356 = vmatprep.subr.mxu0 0.0
    %357 = vmatpush1.msra.mxu0 0.0
    %358 = vmatprep.subr.mxu0 0.0
    %359 = vmatpush1.msra.mxu0 0.0
    %360 = vmatprep.subr.mxu0 0.0
    %361 = vmatpush1.msra.mxu0 0.0
    %362 = vmatprep.subr.mxu0 0.0
    %363 = vmatpush1.msra.mxu0 0.0
    %364 = vmatprep.subr.mxu0 0.0
    %365 = vmatpush1.msra.mxu0 0.0
    %366 = vmatprep.subr.mxu0 0.0
    %367 = vmatpush1.msra.mxu0 0.0
    %368 = vmatprep.subr.mxu0 0.0
    %369 = vmatpush1.msra.mxu0 0.0
    %370 = vmatprep.subr.mxu0 0.0
    %371 = vmatpush1.msra.mxu0 0.0
    %372 = vmatprep.subr.mxu0 0.0
    %373 = vmatpush1.msra.mxu0 0.0
    %374 = vmatprep.subr.mxu0 0.0
    %375 = vmatpush1.msra.mxu0 0.0
    %376 = vmatprep.subr.mxu0 0.0
    %377 = vmatpush1.msra.mxu0 0.0
    %378 = vmatprep.subr.mxu0 0.0
    %379 = vmatpush1.msra.mxu0 0.0
    %380 = vmatprep.subr.mxu0 0.0
    %381 = vmatpush1.msra.mxu0 0.0
    %382 = vmatprep.subr.mxu0 0.0
    %383 = vmatpush1.msra.mxu0 0.0
    %384 = vmatprep.subr.mxu0 0.0
    %385 = vmatpush1.msra.mxu0 0.0
    %386 = vmatprep.subr.mxu0 0.0
    %387 = vmatpush1.msra.mxu0 0.0
    %388 = vmatprep.subr.mxu0 0.0
    %389 = vmatpush1.msra.mxu0 0.0
    %390 = vmatprep.subr.mxu0 0.0
    %391 = vmatpush1.msra.mxu0 0.0
    %392 = vmatprep.subr.mxu0 0.0
    %393 = vmatpush1.msra.mxu0 0.0
    %394 = vmatprep.subr.mxu0 0.0
    %395 = vmatpush1.msra.mxu0 0.0
    %396 = vmatprep.mubr.f32.mxu0 0.0
    %397 = vmatmul.mubr.f32.gmra.mrb[0].mxu0 %v330
    %v398 = vpop.f32.mrb[0].mxu0
    %v399 = vadd.f32 0.0, %v398
    %v400 = vpop.f32.mrb[0].mxu0
    %401 = vdwg.mxu0
    %v404 = vrot.slane %v399, 7
    %v405 = vsel %vm182, %v404, %v319
    %vm407 = vcmask 254976
    %408 = vst.msk [vmem:[#allocation7] sm:$0x3] %vm407, %v405
    // Predicated region
    $region26: #{query_attention_aggregator.1} parent=1 // pred_check
      _
    $region27: #{query_attention_aggregator.1} parent=1 // pred_check_branch
      %410 = sbr.rel (0) target = $region29
    $region28: #{query_attention_aggregator.1} parent=1 // pred_region
      %s412 = ssub.s32 32, 32
      %413 = vsyncadd [#allocation4], %s412
      %s415 = sshll.u32 [#allocation7], 4
      %s416 = int_to_ptr.vmem [resolvable:$true] %s415
      %418 = dma.vmem_to_hbm [thread:$0]  %s416, 32, %s4, [#allocation4]
    $region29: #{query_attention_aggregator.1} parent=1 // pred_fallthru
      _
    // Predicated region
    $region30: #{query_attention_aggregator.1} parent=1 // pred_check
      _
    $region31: #{query_attention_aggregator.1} parent=1 // pred_check_branch
      %420 = sbr.rel (0) target = $region33
    $region32: #{query_attention_aggregator.1} parent=1 // pred_region
      %421 = dma.done [#allocation4], 32
    $region33: #{query_attention_aggregator.1} parent=1 // pred_fallthru
      _
    %422 = vsyncpa [#allocation3], 1
    %423 = vsyncpa [#allocation6], 1
    %424 = vsyncpa [#allocation4], 1

</llo_original>
